<compile_context>
chip_gen: v5e
topology: v5e:2x2
jax: 0.10.0
libtpu: 0.0.40
codegen_flags: <defaults>
</compile_context>

<pallas_src>
import functools

import jax
import jax.numpy as jnp
from jax import lax
from jax.experimental import pallas as pl
from jax.experimental.pallas import tpu as pltpu


# --------------------------------------------------------------------------
# Helpers
# --------------------------------------------------------------------------
def _round_up(x: int, m: int) -> int:
    return (x + m - 1) // m * m


def _pick_tile(dim: int, candidates=(1024, 512, 256, 128)) -> int:
    """Largest lane-friendly tile that divides `dim`; falls back to full dim."""
    for c in candidates:
        if dim % c == 0:
            return c
    return dim


# --------------------------------------------------------------------------
# Encoder tail: AdaptiveAvgPool2d(1) + Flatten  ([B, C, H, W] -> [B, C])
# --------------------------------------------------------------------------
def _global_avg_pool_kernel(x_ref, o_ref):
    # x_ref: (B, S, C) with C lane-dense; reduce over the spatial (sublane) axis.
    o_ref[...] = jnp.mean(x_ref[...], axis=1)


def global_avg_pool(feat: jax.Array) -> jax.Array:
    B, C, H, W = feat.shape
    S = H * W
    # (B, S, C): channels on the lane axis (C is a multiple of 128 for ResNet50).
    x = jnp.transpose(feat.reshape(B, C, S), (0, 2, 1))
    return pl.pallas_call(
        _global_avg_pool_kernel,
        out_shape=jax.ShapeDtypeStruct((B, C), feat.dtype),
        grid_spec=pltpu.PrefetchScalarGridSpec(
            num_scalar_prefetch=0,
            grid=(1,),
            in_specs=[pl.BlockSpec((B, S, C), lambda i: (0, 0, 0))],
            out_specs=pl.BlockSpec((B, C), lambda i: (0, 0)),
        ),
        compiler_params=pltpu.CompilerParams(
            dimension_semantics=("arbitrary",),
            vmem_limit_bytes=32 * 1024 * 1024,
        ),
    )(x)


# --------------------------------------------------------------------------
# Fused Linear (+ folded BatchNorm scale/shift) (+ optional ReLU)
# --------------------------------------------------------------------------
def _fused_linear_kernel(x_ref, w_ref, scale_ref, shift_ref, o_ref, acc_ref,
                         *, apply_relu: bool):
    @pl.when(pl.program_id(2) == 0)
    def _():
        acc_ref[...] = jnp.zeros_like(acc_ref)

    acc_ref[...] += jnp.dot(x_ref[...], w_ref[...],
                            preferred_element_type=jnp.float32)

    @pl.when(pl.program_id(2) == pl.num_programs(2) - 1)
    def _():
        y = acc_ref[...] * scale_ref[...] + shift_ref[...]
        if apply_relu:
            y = jnp.maximum(y, 0.0)
        o_ref[...] = y.astype(o_ref.dtype)


def fused_linear(x: jax.Array, w: jax.Array, scale: jax.Array, shift: jax.Array,
                 *, apply_relu: bool) -> jax.Array:
    """y = relu_opt((x @ w) * scale + shift), tiled matmul on the MXU."""
    M, K = x.shape
    K2, N = w.shape
    assert K == K2, (x.shape, w.shape)
    assert M % 8 == 0, "pad the batch rows to a multiple of 8 before calling"

    tm = M if M <= 256 else _pick_tile(M, (256, 128, 64, 32, 16, 8))
    tk = _pick_tile(K)
    tn = _pick_tile(N)
    grid = (M // tm, N // tn, K // tk)

    scale2d = scale.reshape(1, N).astype(jnp.float32)
    shift2d = shift.reshape(1, N).astype(jnp.float32)

    return pl.pallas_call(
        functools.partial(_fused_linear_kernel, apply_relu=apply_relu),
        out_shape=jax.ShapeDtypeStruct((M, N), x.dtype),
        grid_spec=pltpu.PrefetchScalarGridSpec(
            num_scalar_prefetch=0,
            grid=grid,
            in_specs=[
                pl.BlockSpec((tm, tk), lambda i, j, k: (i, k)),
                pl.BlockSpec((tk, tn), lambda i, j, k: (k, j)),
                pl.BlockSpec((1, tn), lambda i, j, k: (0, j)),
                pl.BlockSpec((1, tn), lambda i, j, k: (0, j)),
            ],
            out_specs=pl.BlockSpec((tm, tn), lambda i, j, k: (i, j)),
            scratch_shapes=[pltpu.VMEM((tm, tn), jnp.float32)],
        ),
        compiler_params=pltpu.CompilerParams(
            dimension_semantics=("parallel", "parallel", "arbitrary"),
            vmem_limit_bytes=32 * 1024 * 1024,
        ),
    )(x, w, scale2d, shift2d)


# --------------------------------------------------------------------------
# SiCoVa forward
# --------------------------------------------------------------------------
def _fold_bn(bias, gamma, beta, mean, var, eps=1e-5):
    """Fold Linear bias + eval-mode BatchNorm1d into per-feature scale/shift."""
    s = gamma * lax.rsqrt(var + eps)
    t = beta - mean * s
    return s, bias * s + t


def sicova_forward(backbone_features: jax.Array, params: dict) -> jax.Array:
    """SiCoVa forward from the ResNet50 feature map to the expanded embedding.

    backbone_features: [B, 2048, h, w]  (output of the ResNet50 conv backbone)
    returns:           [B, 8192]
    """
    # Encoder tail: AdaptiveAvgPool2d(1) + Flatten.
    repr_ = global_avg_pool(backbone_features)            # [B, 2048]
    B = repr_.shape[0]

    # Pad batch rows once so every expander tile is (8,128)-aligned.
    m_pad = _round_up(B, 8)
    x = repr_
    if m_pad != B:
        x = jnp.pad(x, ((0, m_pad - B), (0, 0)))

    # Expander layer 1: Linear(2048, 8192) + BN + ReLU.
    s1, t1 = _fold_bn(params["b1"], params["g1"], params["beta1"],
                      params["mu1"], params["var1"])
    x = fused_linear(x, params["w1"], s1, t1, apply_relu=True)

    # Expander layer 2: Linear(8192, 8192) + BN + ReLU.
    s2, t2 = _fold_bn(params["b2"], params["g2"], params["beta2"],
                      params["mu2"], params["var2"])
    x = fused_linear(x, params["w2"], s2, t2, apply_relu=True)

    # Expander layer 3: Linear(8192, 8192), no BN / ReLU.
    ones = jnp.ones_like(params["b3"])
    x = fused_linear(x, params["w3"], ones, params["b3"], apply_relu=False)

    return x[:B]


# --------------------------------------------------------------------------
# Pure-JAX reference (correctness oracle)
# --------------------------------------------------------------------------
def reference_forward(feat, params, eps=1e-5):
    B, C, H, W = feat.shape
    r = feat.reshape(B, C, H * W).mean(axis=-1)

    def bn(z, g, b, mu, var):
        return (z - mu) * lax.rsqrt(var + eps) * g + b

    z = r @ params["w1"] + params["b1"]
    z = jax.nn.relu(bn(z, params["g1"], params["beta1"], params["mu1"], params["var1"]))
    z = z @ params["w2"] + params["b2"]
    z = jax.nn.relu(bn(z, params["g2"], params["beta2"], params["mu2"], params["var2"]))
    z = z @ params["w3"] + params["b3"]
    return z


# --------------------------------------------------------------------------
# Self-test
# --------------------------------------------------------------------------
if __name__ == "__main__":
    key = jax.random.PRNGKey(0)
    ks = jax.random.split(key, 10)

    # Small backbone feature map (stand-in for ResNet50 conv output): B=2,
    # C=2048 (fixed by the module), tiny 2x2 spatial grid.
    B, C, h, w = 2, 2048, 2, 2
    D_IN, D_OUT = 2048, 8192
    feat = jax.random.normal(ks[0], (B, C, h, w), dtype=jnp.float32)

    def lin(kw, kb, fi, fo):
        wgt = jax.random.normal(kw, (fi, fo), jnp.float32) * (fi ** -0.5)
        bias = 0.01 * jax.random.normal(kb, (fo,), jnp.float32)
        return wgt, bias

    w1, b1 = lin(ks[1], ks[2], D_IN, D_OUT)
    w2, b2 = lin(ks[3], ks[4], D_OUT, D_OUT)
    w3, b3 = lin(ks[5], ks[6], D_OUT, D_OUT)

    def bn_params(k, n):
        k1, k2, k3, k4 = jax.random.split(k, 4)
        return dict(
            g=1.0 + 0.1 * jax.random.normal(k1, (n,), jnp.float32),
            beta=0.1 * jax.random.normal(k2, (n,), jnp.float32),
            mu=0.1 * jax.random.normal(k3, (n,), jnp.float32),
            var=1.0 + 0.1 * jnp.abs(jax.random.normal(k4, (n,), jnp.float32)),
        )

    bn1 = bn_params(ks[7], D_OUT)
    bn2 = bn_params(ks[8], D_OUT)

    params = dict(
        w1=w1, b1=b1, g1=bn1["g"], beta1=bn1["beta"], mu1=bn1["mu"], var1=bn1["var"],
        w2=w2, b2=b2, g2=bn2["g"], beta2=bn2["beta"], mu2=bn2["mu"], var2=bn2["var"],
        w3=w3, b3=b3,
    )

    out = jax.block_until_ready(sicova_forward(feat, params))
    assert out.shape == (B, D_OUT), out.shape
    assert out.dtype == jnp.float32, out.dtype
    assert bool(jnp.all(jnp.isfinite(out))), "non-finite values in output"

    ref = jax.block_until_ready(reference_forward(feat, params))
    rel_err = float(jnp.max(jnp.abs(out - ref)) / (jnp.max(jnp.abs(ref)) + 1e-6))
    assert rel_err < 5e-2, f"mismatch vs pure-JAX reference: rel_err={rel_err}"

    print("KERNEL_OK")
</pallas_src>

<mosaic_0001>
module attributes {stable_mosaic.version = 11 : i64} {
  func.func @_global_avg_pool_kernel(%arg0: i32, %arg1: memref<2x4x2048xf32, #tpu.memory_space<vmem>>, %arg2: memref<2x2048xf32, #tpu.memory_space<vmem>>) attributes {dimension_semantics = [#tpu.dimension_semantics<arbitrary>], iteration_bounds = array<i64: 1>, scalar_prefetch = 0 : i64, scratch_operands = 0 : i64, tpu.core_type = #tpu.core_type<tc>, window_params = [{pipeline_mode = #tpu.pipeline_mode<synchronous>, transform_indices = @transform_0, window_bounds = array<i64: 2, 4, 2048>}, {pipeline_mode = #tpu.pipeline_mode<synchronous>, transform_indices = @transform_1, window_bounds = array<i64: 2, 2048>}]} {
    %c0 = arith.constant 0 : index
    %c0_0 = arith.constant 0 : index
    %c0_1 = arith.constant 0 : index
    %0 = vector.load %arg1[%c0, %c0_0, %c0_1] : memref<2x4x2048xf32, #tpu.memory_space<vmem>>, vector<2x4x2048xf32>
    %cst = arith.constant dense<0.000000e+00> : vector<2x2048xf32>
    %1 = vector.multi_reduction <add>, %0, %cst [1] : vector<2x4x2048xf32> to vector<2x2048xf32>
    %cst_2 = arith.constant 4.000000e+00 : f32
    %2 = vector.broadcast %cst_2 : f32 to vector<2x2048xf32>
    %3 = arith.divf %1, %2 : vector<2x2048xf32>
    %c0_3 = arith.constant 0 : index
    %c0_4 = arith.constant 0 : index
    %4 = vector.load %arg2[%c0_3, %c0_4] : memref<2x2048xf32, #tpu.memory_space<vmem>>, vector<2x2048xf32>
    tpu.vector_store %arg2[%c0_3, %c0_4], %3 {strides = array<i32>} : memref<2x2048xf32, #tpu.memory_space<vmem>>, vector<2x2048xf32>,
    return
  }
  func.func @transform_0(%arg0: i32) -> (i32, i32, i32) {
    %c0_i32 = arith.constant 0 : i32
    %c0_i32_0 = arith.constant 0 : i32
    %c0_i32_1 = arith.constant 0 : i32
    %c0_i32_2 = arith.constant 0 : i32
    return %c0_i32, %c0_i32_0, %c0_i32_1 : i32, i32, i32
  }
  func.func @transform_1(%arg0: i32) -> (i32, i32) {
    %c0_i32 = arith.constant 0 : i32
    %c0_i32_0 = arith.constant 0 : i32
    %c0_i32_1 = arith.constant 0 : i32
    return %c0_i32, %c0_i32_0 : i32, i32
  }
}

</mosaic_0001>

<llo_original>
// kernel: tpu_custom_call.1
$region0: #{tpu_custom_call.1}
  #allocation0 [shape = 'u32[]', space=smem, size = 0x4, offset = 0x4, fixed_abs, tag = 'smem constant byte address 0x4 - core index']
  #allocation1 [shape = 'u32[72,128]{1,0:T(1,128)}', space=vmem, size = 0x9000, scoped, tag = 'internal scratch']
  %s0 = inlined_call_operand.hbm [shape: f32[2,4,2048], index: 0, kind: input, shape index: {}]
  %s1 = inlined_call_operand.hbm [shape: f32[2,2048], index: 1, kind: output, shape index: {}]
  %s2 = sld [smem:[#allocation0]]
  $region18: #{tpu_custom_call.1} parent=0
    _
  %s4 = ssub.s32 1, %s2
  %s5 = scalar_select 0, %s4, %s2
  $region1: #{tpu_custom_call.1} parent=0
    #allocation2 [shape = 'u8[65536]{0}', space=vmem, size = 0x10000, scoped, tag = 'input window, operand 0, single buffered']
    #allocation3 [shape = 's32[1]{0}', space=sflag, size = 0x4, scoped, tag = 'scoped memory for tpu_custom_call.1']
    #allocation4 [shape = 's32[1]{0}', space=sflag, size = 0x4, scoped, tag = 'scoped memory for tpu_custom_call.1']
    #allocation5 [shape = 'u8[16384]{0}', space=vmem, size = 0x4000, scoped, tag = 'output window, operand 0, single buffered']
    %6 = vsyncpa [#allocation3], 0
    %7 = vsyncpa [#allocation4], 0
    // Predicated region
    $region2: #{tpu_custom_call.1} parent=1 // pred_check
      _
    $region3: #{tpu_custom_call.1} parent=1 // pred_check_branch
      %9 = sbr.rel (0) target = $region5
    $region4: #{tpu_custom_call.1} parent=1 // pred_region
      %11 = vsyncadd [#allocation3], 0
      %s12 = sshll.u32 %s0, 4
      %s13 = int_to_ptr.hbm [resolvable:$true] %s12
      %s14 = sshll.u32 [#allocation2], 4
      %s15 = int_to_ptr.vmem [resolvable:$true] %s14
      %20 = dma.hbm_to_vmem [thread:$0]  %s13, 2048, %s15, [#allocation3], 1024, 1024, 64
    $region5: #{tpu_custom_call.1} parent=1 // pred_fallthru
      _
    // Predicated region
    $region6: #{tpu_custom_call.1} parent=1 // pred_check
      _
    $region7: #{tpu_custom_call.1} parent=1 // pred_check_branch
      %22 = sbr.rel (0) target = $region9
    $region8: #{tpu_custom_call.1} parent=1 // pred_region
      %24 = dma.done [#allocation3], 2048
    $region9: #{tpu_custom_call.1} parent=1 // pred_fallthru
      _
    %v25 = vld [vmem:[#allocation2] sm:$0xff]
    %v26 = vld [vmem:[#allocation2 + $0x8] sm:$0xff]
    %v27 = vld [vmem:[#allocation2 + $0x10] sm:$0xff]
    %v28 = vld [vmem:[#allocation2 + $0x18] sm:$0xff]
    %v29 = vld [vmem:[#allocation2 + $0x20] sm:$0xff]
    %v30 = vld [vmem:[#allocation2 + $0x28] sm:$0xff]
    %v31 = vld [vmem:[#allocation2 + $0x30] sm:$0xff]
    %v32 = vld [vmem:[#allocation2 + $0x38] sm:$0xff]
    %v33 = vld [vmem:[#allocation2 + $0x40] sm:$0xff]
    %v34 = vld [vmem:[#allocation2 + $0x48] sm:$0xff]
    %v35 = vld [vmem:[#allocation2 + $0x50] sm:$0xff]
    %v36 = vld [vmem:[#allocation2 + $0x58] sm:$0xff]
    %v37 = vld [vmem:[#allocation2 + $0x60] sm:$0xff]
    %v38 = vld [vmem:[#allocation2 + $0x68] sm:$0xff]
    %v39 = vld [vmem:[#allocation2 + $0x70] sm:$0xff]
    %v40 = vld [vmem:[#allocation2 + $0x78] sm:$0xff]
    %57 = vst [vmem:[#allocation1] ss:$2 sm:$0xff] %v25
    %s58 = scalar_lea.vmem [#allocation1], 16
    %59 = vst [vmem:[%s58] ss:$2 sm:$0xff] %v26
    %s60 = scalar_lea.vmem [#allocation1], 32
    %61 = vst [vmem:[%s60] ss:$2 sm:$0xff] %v27
    %s62 = scalar_lea.vmem [#allocation1], 48
    %63 = vst [vmem:[%s62] ss:$2 sm:$0xff] %v28
    %v64 = vld.sshfl [vmem:[#allocation1] sm:$0xff pattern:$0x75316420]
    %v65 = vld.sshfl [vmem:[#allocation1 + $0x8] sm:$0xff pattern:$0x75316420]
    %v66 = vld.sshfl [vmem:[#allocation1 + $0x10] sm:$0xff pattern:$0x75316420]
    %v67 = vld.sshfl [vmem:[#allocation1 + $0x18] sm:$0xff pattern:$0x75316420]
    %v68 = vld.sshfl [vmem:[#allocation1 + $0x20] sm:$0xff pattern:$0x75316420]
    %v69 = vld.sshfl [vmem:[#allocation1 + $0x28] sm:$0xff pattern:$0x75316420]
    %v70 = vld.sshfl [vmem:[#allocation1 + $0x30] sm:$0xff pattern:$0x75316420]
    %v71 = vld.sshfl [vmem:[#allocation1 + $0x38] sm:$0xff pattern:$0x75316420]
    %72 = vst [vmem:[#allocation1] ss:$2 sm:$0xff] %v29
    %73 = vst [vmem:[%s58] ss:$2 sm:$0xff] %v30
    %74 = vst [vmem:[%s60] ss:$2 sm:$0xff] %v31
    %75 = vst [vmem:[%s62] ss:$2 sm:$0xff] %v32
    %v76 = vld.sshfl [vmem:[#allocation1] sm:$0xff pattern:$0x75316420]
    %v77 = vld.sshfl [vmem:[#allocation1 + $0x8] sm:$0xff pattern:$0x75316420]
    %v78 = vld.sshfl [vmem:[#allocation1 + $0x10] sm:$0xff pattern:$0x75316420]
    %v79 = vld.sshfl [vmem:[#allocation1 + $0x18] sm:$0xff pattern:$0x75316420]
    %v80 = vld.sshfl [vmem:[#allocation1 + $0x20] sm:$0xff pattern:$0x75316420]
    %v81 = vld.sshfl [vmem:[#allocation1 + $0x28] sm:$0xff pattern:$0x75316420]
    %v82 = vld.sshfl [vmem:[#allocation1 + $0x30] sm:$0xff pattern:$0x75316420]
    %v83 = vld.sshfl [vmem:[#allocation1 + $0x38] sm:$0xff pattern:$0x75316420]
    %84 = vst [vmem:[#allocation1] ss:$2 sm:$0xff] %v33
    %85 = vst [vmem:[%s58] ss:$2 sm:$0xff] %v34
    %86 = vst [vmem:[%s60] ss:$2 sm:$0xff] %v35
    %87 = vst [vmem:[%s62] ss:$2 sm:$0xff] %v36
    %v88 = vld.sshfl [vmem:[#allocation1] sm:$0xff pattern:$0x75316420]
    %v89 = vld.sshfl [vmem:[#allocation1 + $0x8] sm:$0xff pattern:$0x75316420]
    %v90 = vld.sshfl [vmem:[#allocation1 + $0x10] sm:$0xff pattern:$0x75316420]
    %v91 = vld.sshfl [vmem:[#allocation1 + $0x18] sm:$0xff pattern:$0x75316420]
    %v92 = vld.sshfl [vmem:[#allocation1 + $0x20] sm:$0xff pattern:$0x75316420]
    %v93 = vld.sshfl [vmem:[#allocation1 + $0x28] sm:$0xff pattern:$0x75316420]
    %v94 = vld.sshfl [vmem:[#allocation1 + $0x30] sm:$0xff pattern:$0x75316420]
    %v95 = vld.sshfl [vmem:[#allocation1 + $0x38] sm:$0xff pattern:$0x75316420]
    %96 = vst [vmem:[#allocation1] ss:$2 sm:$0xff] %v37
    %97 = vst [vmem:[%s58] ss:$2 sm:$0xff] %v38
    %98 = vst [vmem:[%s60] ss:$2 sm:$0xff] %v39
    %99 = vst [vmem:[%s62] ss:$2 sm:$0xff] %v40
    %v100 = vld.sshfl [vmem:[#allocation1] sm:$0xff pattern:$0x75316420]
    %v101 = vld.sshfl [vmem:[#allocation1 + $0x8] sm:$0xff pattern:$0x75316420]
    %v102 = vld.sshfl [vmem:[#allocation1 + $0x10] sm:$0xff pattern:$0x75316420]
    %v103 = vld.sshfl [vmem:[#allocation1 + $0x18] sm:$0xff pattern:$0x75316420]
    %v104 = vld.sshfl [vmem:[#allocation1 + $0x20] sm:$0xff pattern:$0x75316420]
    %v105 = vld.sshfl [vmem:[#allocation1 + $0x28] sm:$0xff pattern:$0x75316420]
    %v106 = vld.sshfl [vmem:[#allocation1 + $0x30] sm:$0xff pattern:$0x75316420]
    %v107 = vld.sshfl [vmem:[#allocation1 + $0x38] sm:$0xff pattern:$0x75316420]
    %vm140 = vcmask 1043456
    %v141 = vsel %vm140, %v64, 0.0
    %v142 = vrot.slane %v141, 4
    %v143 = vadd.f32 %v141, %v142
    %v144 = vrot.slane %v143, 2
    %v145 = vadd.f32 %v143, %v144
    %v146 = vrot.slane %v145, 1
    %v147 = vadd.f32 %v145, %v146
    %v148 = vsel %vm140, %v65, 0.0
    %v149 = vrot.slane %v148, 4
    %v150 = vadd.f32 %v148, %v149
    %v151 = vrot.slane %v150, 2
    %v152 = vadd.f32 %v150, %v151
    %v153 = vrot.slane %v152, 1
    %v154 = vadd.f32 %v152, %v153
    %v155 = vsel %vm140, %v66, 0.0
    %v156 = vrot.slane %v155, 4
    %v157 = vadd.f32 %v155, %v156
    %v158 = vrot.slane %v157, 2
    %v159 = vadd.f32 %v157, %v158
    %v160 = vrot.slane %v159, 1
    %v161 = vadd.f32 %v159, %v160
    %v162 = vsel %vm140, %v67, 0.0
    %v163 = vrot.slane %v162, 4
    %v164 = vadd.f32 %v162, %v163
    %v165 = vrot.slane %v164, 2
    %v166 = vadd.f32 %v164, %v165
    %v167 = vrot.slane %v166, 1
    %v168 = vadd.f32 %v166, %v167
    %v169 = vsel %vm140, %v68, 0.0
    %v170 = vrot.slane %v169, 4
    %v171 = vadd.f32 %v169, %v170
    %v172 = vrot.slane %v171, 2
    %v173 = vadd.f32 %v171, %v172
    %v174 = vrot.slane %v173, 1
    %v175 = vadd.f32 %v173, %v174
    %v176 = vsel %vm140, %v69, 0.0
    %v177 = vrot.slane %v176, 4
    %v178 = vadd.f32 %v176, %v177
    %v179 = vrot.slane %v178, 2
    %v180 = vadd.f32 %v178, %v179
    %v181 = vrot.slane %v180, 1
    %v182 = vadd.f32 %v180, %v181
    %v183 = vsel %vm140, %v70, 0.0
    %v184 = vrot.slane %v183, 4
    %v185 = vadd.f32 %v183, %v184
    %v186 = vrot.slane %v185, 2
    %v187 = vadd.f32 %v185, %v186
    %v188 = vrot.slane %v187, 1
    %v189 = vadd.f32 %v187, %v188
    %v190 = vsel %vm140, %v71, 0.0
    %v191 = vrot.slane %v190, 4
    %v192 = vadd.f32 %v190, %v191
    %v193 = vrot.slane %v192, 2
    %v194 = vadd.f32 %v192, %v193
    %v195 = vrot.slane %v194, 1
    %v196 = vadd.f32 %v194, %v195
    %v197 = vsel %vm140, %v76, 0.0
    %v198 = vrot.slane %v197, 4
    %v199 = vadd.f32 %v197, %v198
    %v200 = vrot.slane %v199, 2
    %v201 = vadd.f32 %v199, %v200
    %v202 = vrot.slane %v201, 1
    %v203 = vadd.f32 %v201, %v202
    %v204 = vsel %vm140, %v77, 0.0
    %v205 = vrot.slane %v204, 4
    %v206 = vadd.f32 %v204, %v205
    %v207 = vrot.slane %v206, 2
    %v208 = vadd.f32 %v206, %v207
    %v209 = vrot.slane %v208, 1
    %v210 = vadd.f32 %v208, %v209
    %v211 = vsel %vm140, %v78, 0.0
    %v212 = vrot.slane %v211, 4
    %v213 = vadd.f32 %v211, %v212
    %v214 = vrot.slane %v213, 2
    %v215 = vadd.f32 %v213, %v214
    %v216 = vrot.slane %v215, 1
    %v217 = vadd.f32 %v215, %v216
    %v218 = vsel %vm140, %v79, 0.0
    %v219 = vrot.slane %v218, 4
    %v220 = vadd.f32 %v218, %v219
    %v221 = vrot.slane %v220, 2
    %v222 = vadd.f32 %v220, %v221
    %v223 = vrot.slane %v222, 1
    %v224 = vadd.f32 %v222, %v223
    %v225 = vsel %vm140, %v80, 0.0
    %v226 = vrot.slane %v225, 4
    %v227 = vadd.f32 %v225, %v226
    %v228 = vrot.slane %v227, 2
    %v229 = vadd.f32 %v227, %v228
    %v230 = vrot.slane %v229, 1
    %v231 = vadd.f32 %v229, %v230
    %v232 = vsel %vm140, %v81, 0.0
    %v233 = vrot.slane %v232, 4
    %v234 = vadd.f32 %v232, %v233
    %v235 = vrot.slane %v234, 2
    %v236 = vadd.f32 %v234, %v235
    %v237 = vrot.slane %v236, 1
    %v238 = vadd.f32 %v236, %v237
    %v239 = vsel %vm140, %v82, 0.0
    %v240 = vrot.slane %v239, 4
    %v241 = vadd.f32 %v239, %v240
    %v242 = vrot.slane %v241, 2
    %v243 = vadd.f32 %v241, %v242
    %v244 = vrot.slane %v243, 1
    %v245 = vadd.f32 %v243, %v244
    %v246 = vsel %vm140, %v83, 0.0
    %v247 = vrot.slane %v246, 4
    %v248 = vadd.f32 %v246, %v247
    %v249 = vrot.slane %v248, 2
    %v250 = vadd.f32 %v248, %v249
    %v251 = vrot.slane %v250, 1
    %v252 = vadd.f32 %v250, %v251
    %v253 = vsel %vm140, %v88, 0.0
    %v254 = vrot.slane %v253, 4
    %v255 = vadd.f32 %v253, %v254
    %v256 = vrot.slane %v255, 2
    %v257 = vadd.f32 %v255, %v256
    %v258 = vrot.slane %v257, 1
    %v259 = vadd.f32 %v257, %v258
    %v260 = vsel %vm140, %v89, 0.0
    %v261 = vrot.slane %v260, 4
    %v262 = vadd.f32 %v260, %v261
    %v263 = vrot.slane %v262, 2
    %v264 = vadd.f32 %v262, %v263
    %v265 = vrot.slane %v264, 1
    %v266 = vadd.f32 %v264, %v265
    %v267 = vsel %vm140, %v90, 0.0
    %v268 = vrot.slane %v267, 4
    %v269 = vadd.f32 %v267, %v268
    %v270 = vrot.slane %v269, 2
    %v271 = vadd.f32 %v269, %v270
    %v272 = vrot.slane %v271, 1
    %v273 = vadd.f32 %v271, %v272
    %v274 = vsel %vm140, %v91, 0.0
    %v275 = vrot.slane %v274, 4
    %v276 = vadd.f32 %v274, %v275
    %v277 = vrot.slane %v276, 2
    %v278 = vadd.f32 %v276, %v277
    %v279 = vrot.slane %v278, 1
    %v280 = vadd.f32 %v278, %v279
    %v281 = vsel %vm140, %v92, 0.0
    %v282 = vrot.slane %v281, 4
    %v283 = vadd.f32 %v281, %v282
    %v284 = vrot.slane %v283, 2
    %v285 = vadd.f32 %v283, %v284
    %v286 = vrot.slane %v285, 1
    %v287 = vadd.f32 %v285, %v286
    %v288 = vsel %vm140, %v93, 0.0
    %v289 = vrot.slane %v288, 4
    %v290 = vadd.f32 %v288, %v289
    %v291 = vrot.slane %v290, 2
    %v292 = vadd.f32 %v290, %v291
    %v293 = vrot.slane %v292, 1
    %v294 = vadd.f32 %v292, %v293
    %v295 = vsel %vm140, %v94, 0.0
    %v296 = vrot.slane %v295, 4
    %v297 = vadd.f32 %v295, %v296
    %v298 = vrot.slane %v297, 2
    %v299 = vadd.f32 %v297, %v298
    %v300 = vrot.slane %v299, 1
    %v301 = vadd.f32 %v299, %v300
    %v302 = vsel %vm140, %v95, 0.0
    %v303 = vrot.slane %v302, 4
    %v304 = vadd.f32 %v302, %v303
    %v305 = vrot.slane %v304, 2
    %v306 = vadd.f32 %v304, %v305
    %v307 = vrot.slane %v306, 1
    %v308 = vadd.f32 %v306, %v307
    %v309 = vsel %vm140, %v100, 0.0
    %v310 = vrot.slane %v309, 4
    %v311 = vadd.f32 %v309, %v310
    %v312 = vrot.slane %v311, 2
    %v313 = vadd.f32 %v311, %v312
    %v314 = vrot.slane %v313, 1
    %v315 = vadd.f32 %v313, %v314
    %v316 = vsel %vm140, %v101, 0.0
    %v317 = vrot.slane %v316, 4
    %v318 = vadd.f32 %v316, %v317
    %v319 = vrot.slane %v318, 2
    %v320 = vadd.f32 %v318, %v319
    %v321 = vrot.slane %v320, 1
    %v322 = vadd.f32 %v320, %v321
    %v323 = vsel %vm140, %v102, 0.0
    %v324 = vrot.slane %v323, 4
    %v325 = vadd.f32 %v323, %v324
    %v326 = vrot.slane %v325, 2
    %v327 = vadd.f32 %v325, %v326
    %v328 = vrot.slane %v327, 1
    %v329 = vadd.f32 %v327, %v328
    %v330 = vsel %vm140, %v103, 0.0
    %v331 = vrot.slane %v330, 4
    %v332 = vadd.f32 %v330, %v331
    %v333 = vrot.slane %v332, 2
    %v334 = vadd.f32 %v332, %v333
    %v335 = vrot.slane %v334, 1
    %v336 = vadd.f32 %v334, %v335
    %v337 = vsel %vm140, %v104, 0.0
    %v338 = vrot.slane %v337, 4
    %v339 = vadd.f32 %v337, %v338
    %v340 = vrot.slane %v339, 2
    %v341 = vadd.f32 %v339, %v340
    %v342 = vrot.slane %v341, 1
    %v343 = vadd.f32 %v341, %v342
    %v344 = vsel %vm140, %v105, 0.0
    %v345 = vrot.slane %v344, 4
    %v346 = vadd.f32 %v344, %v345
    %v347 = vrot.slane %v346, 2
    %v348 = vadd.f32 %v346, %v347
    %v349 = vrot.slane %v348, 1
    %v350 = vadd.f32 %v348, %v349
    %v351 = vsel %vm140, %v106, 0.0
    %v352 = vrot.slane %v351, 4
    %v353 = vadd.f32 %v351, %v352
    %v354 = vrot.slane %v353, 2
    %v355 = vadd.f32 %v353, %v354
    %v356 = vrot.slane %v355, 1
    %v357 = vadd.f32 %v355, %v356
    %v358 = vsel %vm140, %v107, 0.0
    %v359 = vrot.slane %v358, 4
    %v360 = vadd.f32 %v358, %v359
    %v361 = vrot.slane %v360, 2
    %v362 = vadd.f32 %v360, %v361
    %v363 = vrot.slane %v362, 1
    %v364 = vadd.f32 %v362, %v363
    %v365 = vrcp.pop 4.0
    %v366 = vmul.f32 4.0, %v365
    %v367 = vsub.f32 1.0, %v366
    %v368 = vmul.f32 %v365, %v367
    %v369 = vadd.f32 %v365, %v368
    %vm370 = vweird.f32 %v365
    %v371 = vsel %vm370, %v365, %v369
    %v372 = vmul.f32 %v147, %v371
    %v373 = vmul.f32 %v154, %v371
    %v374 = vmul.f32 %v161, %v371
    %v375 = vmul.f32 %v168, %v371
    %v376 = vmul.f32 %v175, %v371
    %v377 = vmul.f32 %v182, %v371
    %v378 = vmul.f32 %v189, %v371
    %v379 = vmul.f32 %v196, %v371
    %v380 = vmul.f32 %v203, %v371
    %v381 = vmul.f32 %v210, %v371
    %v382 = vmul.f32 %v217, %v371
    %v383 = vmul.f32 %v224, %v371
    %v384 = vmul.f32 %v231, %v371
    %v385 = vmul.f32 %v238, %v371
    %v386 = vmul.f32 %v245, %v371
    %v387 = vmul.f32 %v252, %v371
    %v388 = vmul.f32 %v259, %v371
    %v389 = vmul.f32 %v266, %v371
    %v390 = vmul.f32 %v273, %v371
    %v391 = vmul.f32 %v280, %v371
    %v392 = vmul.f32 %v287, %v371
    %v393 = vmul.f32 %v294, %v371
    %v394 = vmul.f32 %v301, %v371
    %v395 = vmul.f32 %v308, %v371
    %v396 = vmul.f32 %v315, %v371
    %v397 = vmul.f32 %v322, %v371
    %v398 = vmul.f32 %v329, %v371
    %v399 = vmul.f32 %v336, %v371
    %v400 = vmul.f32 %v343, %v371
    %v401 = vmul.f32 %v350, %v371
    %v402 = vmul.f32 %v357, %v371
    %v403 = vmul.f32 %v364, %v371
    %v436 = vrot.slane %v373, 6
    %v437 = vrot.slane %v374, 4
    %v438 = vrot.slane %v375, 2
    %v439 = vrot.slane %v377, 6
    %v440 = vrot.slane %v378, 4
    %v441 = vrot.slane %v379, 2
    %v442 = vrot.slane %v381, 6
    %v443 = vrot.slane %v382, 4
    %v444 = vrot.slane %v383, 2
    %v445 = vrot.slane %v385, 6
    %v446 = vrot.slane %v386, 4
    %v447 = vrot.slane %v387, 2
    %v448 = vrot.slane %v389, 6
    %v449 = vrot.slane %v390, 4
    %v450 = vrot.slane %v391, 2
    %v451 = vrot.slane %v393, 6
    %v452 = vrot.slane %v394, 4
    %v453 = vrot.slane %v395, 2
    %v454 = vrot.slane %v397, 6
    %v455 = vrot.slane %v398, 4
    %v456 = vrot.slane %v399, 2
    %v457 = vrot.slane %v401, 6
    %v458 = vrot.slane %v402, 4
    %v459 = vrot.slane %v403, 2
    %vm460 = vcmask 1041408
    %v461 = vsel %vm460, %v372, %v436
    %vm462 = vcmask 1045508
    %v463 = vsel %vm462, %v437, %v438
    %v464 = vsel %vm140, %v461, %v463
    %v465 = vsel %vm460, %v376, %v439
    %v466 = vsel %vm462, %v440, %v441
    %v467 = vsel %vm140, %v465, %v466
    %v468 = vsel %vm460, %v380, %v442
    %v469 = vsel %vm462, %v443, %v444
    %v470 = vsel %vm140, %v468, %v469
    %v471 = vsel %vm460, %v384, %v445
    %v472 = vsel %vm462, %v446, %v447
    %v473 = vsel %vm140, %v471, %v472
    %v474 = vsel %vm460, %v388, %v448
    %v475 = vsel %vm462, %v449, %v450
    %v476 = vsel %vm140, %v474, %v475
    %v477 = vsel %vm460, %v392, %v451
    %v478 = vsel %vm462, %v452, %v453
    %v479 = vsel %vm140, %v477, %v478
    %v480 = vsel %vm460, %v396, %v454
    %v481 = vsel %vm462, %v455, %v456
    %v482 = vsel %vm140, %v480, %v481
    %v483 = vsel %vm460, %v400, %v457
    %v484 = vsel %vm462, %v458, %v459
    %v485 = vsel %vm140, %v483, %v484
    %vm486 = vcmask 1044484
    %v487 = vsel %vm486, %v464, %v464
    %vm488 = vcmask 1046534
    %v489 = vsel %vm488, %v464, %v487
    %v490 = vrot.slane %v476, 7
    %vm491 = vcmask 1041409
    %v492 = vsel %vm491, %v490, %v489
    %vm493 = vcmask 1043459
    %v494 = vsel %vm493, %v490, %v492
    %vm495 = vcmask 1045509
    %v496 = vsel %vm495, %v490, %v494
    %vm497 = vcmask 1047559
    %v498 = vsel %vm497, %v490, %v496
    %v499 = vsel %vm486, %v467, %v467
    %v500 = vsel %vm488, %v467, %v499
    %v501 = vrot.slane %v479, 7
    %v502 = vsel %vm491, %v501, %v500
    %v503 = vsel %vm493, %v501, %v502
    %v504 = vsel %vm495, %v501, %v503
    %v505 = vsel %vm497, %v501, %v504
    %v506 = vsel %vm486, %v470, %v470
    %v507 = vsel %vm488, %v470, %v506
    %v508 = vrot.slane %v482, 7
    %v509 = vsel %vm491, %v508, %v507
    %v510 = vsel %vm493, %v508, %v509
    %v511 = vsel %vm495, %v508, %v510
    %v512 = vsel %vm497, %v508, %v511
    %v513 = vsel %vm486, %v473, %v473
    %v514 = vsel %vm488, %v473, %v513
    %v515 = vrot.slane %v485, 7
    %v516 = vsel %vm491, %v515, %v514
    %v517 = vsel %vm493, %v515, %v516
    %v518 = vsel %vm495, %v515, %v517
    %v519 = vsel %vm497, %v515, %v518
    %524 = vst [vmem:[#allocation5] sm:$0xff] %v498
    %525 = vst [vmem:[#allocation5 + $0x8] sm:$0xff] %v505
    %526 = vst [vmem:[#allocation5 + $0x10] sm:$0xff] %v512
    %527 = vst [vmem:[#allocation5 + $0x18] sm:$0xff] %v519
    // Predicated region
    $region10: #{tpu_custom_call.1} parent=1 // pred_check
      _
    $region11: #{tpu_custom_call.1} parent=1 // pred_check_branch
      %529 = sbr.rel (0) target = $region13
    $region12: #{tpu_custom_call.1} parent=1 // pred_region
      %531 = vsyncadd [#allocation4], 0
      %s533 = sshll.u32 [#allocation5], 4
      %s534 = int_to_ptr.vmem [resolvable:$true] %s533
      %s535 = sshll.u32 %s1, 4
      %s536 = int_to_ptr.hbm [resolvable:$true] %s535
      %538 = dma.vmem_to_hbm [thread:$0]  %s534, 512, %s536, [#allocation4]
    $region13: #{tpu_custom_call.1} parent=1 // pred_fallthru
      _
    // Predicated region
    $region14: #{tpu_custom_call.1} parent=1 // pred_check
      _
    $region15: #{tpu_custom_call.1} parent=1 // pred_check_branch
      %540 = sbr.rel (0) target = $region17
    $region16: #{tpu_custom_call.1} parent=1 // pred_region
      %542 = dma.done [#allocation4], 512
    $region17: #{tpu_custom_call.1} parent=1 // pred_fallthru
      _
    %543 = vsyncpa [#allocation3], 1
    %544 = vsyncpa [#allocation4], 1

</llo_original>
